<compile_context>
chip_gen: v7x
topology: tpu7x:2x2x1
jax: 0.10.0
libtpu: 0.0.40
codegen_flags: <defaults>
</compile_context>

<pallas_src>
import jax
import jax.numpy as jnp
from jax.experimental import pallas as pl
from jax.experimental.pallas import tpu as pltpu


def _round_up(x: int, m: int) -> int:
    return ((x + m - 1) // m) * m


def _make_sin_max_kernel(n, block_rows, cols, inner_blocks, needs_mask):
    """Build the kernel with all geometry baked in as Python constants."""

    def kernel(x_ref, o_ref, acc_ref):
        p = pl.program_id(0)          # parallel (per-TensorCore) axis
        i = pl.program_id(1)          # reduction axis

        @pl.when(i == 0)
        def _init():
            # -1 is the global minimum of sin -> identity for this max.
            acc_ref[...] = jnp.full((8, cols), -1.0, dtype=jnp.float32)

        s = jnp.sin(x_ref[...].astype(jnp.float32))

        if needs_mask:  # static Python condition; omitted entirely when exact
            row = jax.lax.broadcasted_iota(jnp.int32, (block_rows, cols), 0)
            col = jax.lax.broadcasted_iota(jnp.int32, (block_rows, cols), 1)
            logical_block = p * inner_blocks + i          # un-clamped block id
            flat = (logical_block * block_rows + row) * cols + col
            s = jnp.where(flat < n, s, -1.0)

        # Fold block_rows -> 8 sublanes: pure VPU maxima across whole vreg
        # slabs (no XLU work, no sub-lane stores in the steady state).
        part = jnp.max(s.reshape(block_rows // 8, 8, cols), axis=0)
        acc_ref[...] = jnp.maximum(acc_ref[...], part)

        @pl.when(i == pl.num_programs(1) - 1)
        def _finalize():
            o_ref[...] = acc_ref[...]   # lane-dense unmasked store, once per p

    return kernel


def module_basic_forward(x: jax.Array) -> jax.Array:
    """Pallas implementation of ModuleBasic.forward: sin(x).max()."""
    x_flat = x.reshape(-1)
    n = int(x_flat.shape[0])
    if n == 0:
        raise ValueError("max() of an empty tensor is undefined")
    orig_dtype = x_flat.dtype

    # Slab geometry: tiny inputs -> a single (8, 128) vreg-aligned block;
    # large inputs -> lane-dense 512-wide slab with up to 4 MiB blocks.
    cols = 128 if n <= 4096 else 512
    MAX_BLOCK_ROWS = 2048        # (2048, 512) f32 = 4 MiB/block, 8 MiB dbl-buf

    rows_exact = -(-n // cols)
    if n == rows_exact * cols and rows_exact % 8 == 0:
        rows = rows_exact
        x2 = x_flat.reshape(rows, cols)            # free bitcast, no HBM copy
    else:
        # TODO(synk): for huge N not divisible by `cols` this pad is still one
        # extra HBM pass; a 1-D blocked layout would avoid it.
        rows = _round_up(rows_exact, 8)
        x2 = jnp.pad(x_flat, (0, rows * cols - n)).reshape(rows, cols)

    block_rows = min(MAX_BLOCK_ROWS, rows)         # multiple of 8, <= rows
    num_blocks = -(-rows // block_rows)

    # Outer "parallel" axis lets v7x's two TensorCores split the work; on
    # v5e/v6e (one TC) it is just a cheap sequential outer loop.
    num_par = 2 if num_blocks >= 2 else 1
    inner_blocks = -(-num_blocks // num_par)

    covered = num_par * inner_blocks * block_rows * cols
    needs_mask = covered != n

    if num_par * inner_blocks == num_blocks:
        in_index = lambda p, i: (p * inner_blocks + i, 0)
    else:
        # Clamp so the DMA never walks past the array; the in-kernel iota mask
        # discards any re-read rows.
        in_index = lambda p, i: (jnp.minimum(p * inner_blocks + i,
                                             num_blocks - 1), 0)

    kernel = _make_sin_max_kernel(n, block_rows, cols, inner_blocks, needs_mask)

    cost = pl.CostEstimate(
        flops=2 * n,                 # ~1 compare + 1 select per real element
        transcendentals=n,           # one sin per real element
        bytes_accessed=4 * n + 4 * 8 * cols * num_par,
    )

    partials = pl.pallas_call(
        kernel,
        out_shape=jax.ShapeDtypeStruct((8 * num_par, cols), jnp.float32),
        grid=(num_par, inner_blocks),
        in_specs=[pl.BlockSpec((block_rows, cols), in_index)],
        out_specs=pl.BlockSpec((8, cols), lambda p, i: (p, 0)),
        scratch_shapes=[pltpu.VMEM((8, cols), jnp.float32)],
        compiler_params=pltpu.CompilerParams(
            dimension_semantics=("parallel", "arbitrary"),
        ),
        cost_estimate=cost,
    )(x2)

    # Final tiny reduction over <= 8K lane-dense partials (plain XLA).
    return jnp.max(partials).astype(orig_dtype)


if __name__ == "__main__":
    key = jax.random.PRNGKey(0)
    # Matches ModuleBasic.get_random_inputs(): one float32 vector of length 100.
    x = jax.random.normal(key, (100,), dtype=jnp.float32)

    out = module_basic_forward(x)
    jax.block_until_ready(out)

    ref = jnp.max(jnp.sin(x))
    assert out.shape == ref.shape, (out.shape, ref.shape)
    assert out.dtype == ref.dtype, (out.dtype, ref.dtype)
    assert jnp.allclose(out, ref, rtol=1e-6, atol=1e-6)

    print("KERNEL_OK")
</pallas_src>

<mosaic_0001>
module attributes {stable_mosaic.version = 11 : i64} {
  func.func @kernel(%arg0: i32, %arg1: i32, %arg2: memref<8x128xf32, #tpu.memory_space<vmem>>, %arg3: memref<8x128xf32, #tpu.memory_space<vmem>>, %arg4: memref<8x128xf32, #tpu.memory_space<vmem>>) attributes {dimension_semantics = [#tpu.dimension_semantics<parallel>, #tpu.dimension_semantics<arbitrary>], iteration_bounds = array<i64: 1, 1>, scalar_prefetch = 0 : i64, scratch_operands = 1 : i64, tpu.core_type = #tpu.core_type<tc>, window_params = [{transform_indices = @transform_0, window_bounds = array<i64: 8, 128>}, {transform_indices = @transform_1, window_bounds = array<i64: 8, 128>}]} {
    %c0_i32 = arith.constant 0 : i32
    %0 = arith.cmpi eq, %arg1, %c0_i32 : i32
    %1 = arith.extui %0 : i1 to i32
    %c0_i32_0 = arith.constant 0 : i32
    %2 = arith.cmpi ne, %1, %c0_i32_0 : i32
    scf.if %2 {
      %cst_9 = arith.constant -1.000000e+00 : f32
      %27 = vector.broadcast %cst_9 : f32 to vector<8x128xf32>
      %c0_10 = arith.constant 0 : index
      %c0_11 = arith.constant 0 : index
      %28 = vector.load %arg4[%c0_10, %c0_11] : memref<8x128xf32, #tpu.memory_space<vmem>>, vector<8x128xf32>
      tpu.vector_store %arg4[%c0_10, %c0_11], %27 {strides = array<i32>} : memref<8x128xf32, #tpu.memory_space<vmem>>, vector<8x128xf32>,
    } else {
    }
    %c0 = arith.constant 0 : index
    %c0_1 = arith.constant 0 : index
    %3 = vector.load %arg2[%c0, %c0_1] : memref<8x128xf32, #tpu.memory_space<vmem>>, vector<8x128xf32>
    %4 = math.sin %3 : vector<8x128xf32>
    %5 = tpu.iota {dimensions = array<i32: 0>} : vector<8x128xi32>
    %6 = tpu.iota {dimensions = array<i32: 1>} : vector<8x128xi32>
    %c1_i32 = arith.constant 1 : i32
    %7 = arith.muli %arg0, %c1_i32 : i32
    %8 = arith.addi %7, %arg1 : i32
    %c8_i32 = arith.constant 8 : i32
    %9 = arith.muli %8, %c8_i32 : i32
    %10 = vector.broadcast %9 : i32 to vector<8x128xi32>
    %11 = arith.addi %10, %5 : vector<8x128xi32>
    %c128_i32 = arith.constant 128 : i32
    %12 = vector.broadcast %c128_i32 : i32 to vector<8x128xi32>
    %13 = arith.muli %11, %12 : vector<8x128xi32>
    %14 = arith.addi %13, %6 : vector<8x128xi32>
    %c100_i32 = arith.constant 100 : i32
    %15 = vector.broadcast %c100_i32 : i32 to vector<8x128xi32>
    %16 = arith.cmpi slt, %14, %15 : vector<8x128xi32>
    %cst = arith.constant -1.000000e+00 : f32
    %17 = vector.broadcast %cst : f32 to vector<8x128xf32>
    %18 = arith.select %16, %4, %17 : vector<8x128xi1>, vector<8x128xf32>
    %19 = vector.shape_cast %18 : vector<8x128xf32> to vector<1x8x128xf32>
    %cst_2 = arith.constant dense<0xFF800000> : vector<8x128xf32>
    %20 = vector.multi_reduction <maximumf>, %19, %cst_2 [0] : vector<1x8x128xf32> to vector<8x128xf32>
    %c0_3 = arith.constant 0 : index
    %c0_4 = arith.constant 0 : index
    %21 = vector.load %arg4[%c0_3, %c0_4] : memref<8x128xf32, #tpu.memory_space<vmem>>, vector<8x128xf32>
    %22 = arith.maximumf %21, %20 : vector<8x128xf32>
    %c0_5 = arith.constant 0 : index
    %c0_6 = arith.constant 0 : index
    %23 = vector.load %arg4[%c0_5, %c0_6] : memref<8x128xf32, #tpu.memory_space<vmem>>, vector<8x128xf32>
    tpu.vector_store %arg4[%c0_5, %c0_6], %22 {strides = array<i32>} : memref<8x128xf32, #tpu.memory_space<vmem>>, vector<8x128xf32>,
    %c0_i32_7 = arith.constant 0 : i32
    %24 = arith.cmpi eq, %arg1, %c0_i32_7 : i32
    %25 = arith.extui %24 : i1 to i32
    %c0_i32_8 = arith.constant 0 : i32
    %26 = arith.cmpi ne, %25, %c0_i32_8 : i32
    scf.if %26 {
      %c0_9 = arith.constant 0 : index
      %c0_10 = arith.constant 0 : index
      %27 = vector.load %arg4[%c0_9, %c0_10] : memref<8x128xf32, #tpu.memory_space<vmem>>, vector<8x128xf32>
      %c0_11 = arith.constant 0 : index
      %c0_12 = arith.constant 0 : index
      %28 = vector.load %arg3[%c0_11, %c0_12] : memref<8x128xf32, #tpu.memory_space<vmem>>, vector<8x128xf32>
      tpu.vector_store %arg3[%c0_11, %c0_12], %27 {strides = array<i32>} : memref<8x128xf32, #tpu.memory_space<vmem>>, vector<8x128xf32>,
    } else {
    }
    return
  }
  func.func @transform_0(%arg0: i32, %arg1: i32) -> (i32, i32) {
    %c1_i32 = arith.constant 1 : i32
    %0 = arith.muli %arg0, %c1_i32 : i32
    %1 = arith.addi %0, %arg1 : i32
    %c0_i32 = arith.constant 0 : i32
    %c0_i32_0 = arith.constant 0 : i32
    return %1, %c0_i32 : i32, i32
  }
  func.func @transform_1(%arg0: i32, %arg1: i32) -> (i32, i32) {
    %c0_i32 = arith.constant 0 : i32
    %c0_i32_0 = arith.constant 0 : i32
    return %arg0, %c0_i32 : i32, i32
  }
}

</mosaic_0001>

<llo_original>
// kernel: tpu_custom_call.1
$region0: #{tpu_custom_call.1}
  #allocation0 [shape = 'u32[]', space=smem, size = 0x4, offset = 0x4, fixed_abs, tag = 'smem constant byte address 0x4 - core index']
  #allocation1 [shape = 'u32[144,128]{1,0:T(1,128)}', space=vmem, size = 0x12000, scoped, tag = 'internal scratch']
  #allocation2 [shape = 'f32[8,128]{1,0:T(8,128)}', space=vmem, size = 0x1000, scoped, tag = 'scratch operand']
  %s0 = inlined_call_operand.hbm [shape: f32[8,128], index: 0, kind: input, shape index: {}]
  %s1 = inlined_call_operand.hbm [shape: f32[8,128], index: 1, kind: output, shape index: {}]
  %s2 = sld [smem:[#allocation0]]
  $region26: #{tpu_custom_call.1} parent=0
    _
  %s4 = ssub.s32 1, %s2
  %s5 = scalar_select 0, %s4, %s2
  $region1: #{tpu_custom_call.1} parent=0
    #allocation3 [shape = 'u8[4096]{0}', space=vmem, size = 0x1000, scoped, tag = 'input window, operand 0, single buffered']
    #allocation4 [shape = 's32[1]{0}', space=sflag, size = 0x4, scoped, tag = 'scoped memory for tpu_custom_call.1']
    #allocation5 [shape = 's32[1]{0}', space=sflag, size = 0x4, scoped, tag = 'scoped memory for tpu_custom_call.1']
    #allocation6 [shape = 'u8[4096]{0}', space=vmem, size = 0x1000, scoped, tag = 'output window, operand 0, single buffered']
    %6 = vsyncpa [#allocation4], 0
    %7 = vsyncpa [#allocation5], 0
    // Predicated region
    $region2: #{tpu_custom_call.1} parent=1 // pred_check
      _
    $region3: #{tpu_custom_call.1} parent=1 // pred_check_branch
      %9 = sbr.rel (0) target = $region5
    $region4: #{tpu_custom_call.1} parent=1 // pred_region
      %s10 = sadd.s32 0, 0
      %s12 = ssub.s32 128, 128
      %13 = vsyncadd [#allocation4], %s12
      %s14 = smul.addr %s10, 128
      %s15 = scalar_lea.hbm %s0, %s14
      %s17 = sshll.u32 [#allocation3], 4
      %s18 = int_to_ptr.vmem [resolvable:$true] %s17
      %20 = dma.hbm_to_vmem [thread:$0]  %s15, 128, %s18, [#allocation4]
    $region5: #{tpu_custom_call.1} parent=1 // pred_fallthru
      _
    // Predicated region
    $region6: #{tpu_custom_call.1} parent=1 // pred_check
      _
    $region7: #{tpu_custom_call.1} parent=1 // pred_check_branch
      %22 = sbr.rel (0) target = $region9
    $region8: #{tpu_custom_call.1} parent=1 // pred_region
      %23 = dma.done [#allocation4], 128
    $region9: #{tpu_custom_call.1} parent=1 // pred_fallthru
      _
    %s24 = sadd.s32 0, 0
    %p25 = scmp.eq.s32.totalorder 0, 0
    // Predicated region
    $region10: #{tpu_custom_call.1} parent=1 // pred_check
      %p26 = pneg %p25
    $region11: #{tpu_custom_call.1} parent=1 // pred_check_branch
      %28 = sbr.rel (%p26) target = $region13
    $region12: #{tpu_custom_call.1} parent=1 // pred_region
      %29 = vst [vmem:[#allocation2] sm:$0xff] -1.0
    $region13: #{tpu_custom_call.1} parent=1 // pred_fallthru
      _
    %v30 = vld [vmem:[#allocation3] sm:$0xff]
    %v31 = vand.u32 2147483647, %v30
    %vm32 = vcmp.le.f32.partialorder %v31, 0.7853982
    %vm33 = vcmp.lt.s32.totalorder %v30, 0
    %v34 = vand.u32 %v30, 2139095040
    %v35 = vshrl.u32 %v34, 23
    %v36 = vsub.s32 %v35, 127
    %v37 = vand.u32 2147483647, %v30
    %v38 = vand.u32 %v37, 8388607
    %v39 = vor.u32 %v38, 8388608
    %v40 = vsub.s32 0, %v39
    %v41 = vadd.s32 %v36, 1
    %vm42 = vcmp.gt.s32.totalorder %v41, 0
    %v43 = vsel %vm42, %v41, 0
    %v44 = vshrl.u32 %v43, 5
    %v45 = vand.u32 %v43, 31
    %v46 = vsub.s32 32, %v45
    %v47 = vshrl.u32 683565275, %v46
    %v48 = vshll.u32 683565275, %v45
    %v49 = vshrl.u32 2475754826, %v46
    %v50 = vor.u32 %v48, %v49
    %v51 = vshll.u32 2475754826, %v45
    %v52 = vshrl.u32 2131351028, %v46
    %v53 = vor.u32 %v51, %v52
    %v54 = vshll.u32 2131351028, %v45
    %v55 = vshrl.u32 2102212464, %v46
    %v56 = vor.u32 %v54, %v55
    %v57 = vshll.u32 2102212464, %v45
    %v58 = vshrl.u32 920167782, %v46
    %v59 = vor.u32 %v57, %v58
    %v60 = vshll.u32 920167782, %v45
    %v61 = vshrl.u32 1326507024, %v46
    %v62 = vor.u32 %v60, %v61
    %vm63 = vcmp.lt.s32.totalorder %v44, 1
    %vm64 = vcmp.lt.s32.totalorder %v44, 2
    %vm65 = vcmp.lt.s32.totalorder %v44, 3
    %vm66 = vcmp.lt.s32.totalorder %v44, 4
    %v67 = vsel %vm63, %v47, %v50
    %v68 = vsel %vm66, %v56, 2102212464
    %v69 = vsel %vm65, %v53, %v68
    %v70 = vsel %vm64, %v67, %v69
    %v71 = vsel %vm63, %v50, %v53
    %v72 = vsel %vm66, %v59, 920167782
    %v73 = vsel %vm65, %v56, %v72
    %v74 = vsel %vm64, %v71, %v73
    %v75 = vsel %vm63, %v53, %v56
    %v76 = vsel %vm66, %v62, 1326507024
    %v77 = vsel %vm65, %v59, %v76
    %v78 = vsel %vm64, %v75, %v77
    %v79 = vshll.u32 %v39, 8
    %v80 = vmul.u32.u64.compose %v79, %v78
    %v81 = vextract.low.u32 %v80
    %v82 = vextract.high.u32 %v80
    %v83 = vmul.u32.u64.compose %v79, %v74
    %v84 = vextract.low.u32 %v83
    %v85 = vextract.high.u32 %v83
    %v86 = vmul.u32 %v79, %v70
    %v87 = vadd.s32 %v82, %v84
    %vm88 = vc.u32 %v82, %v84
    %v89 = vadd.s32 %v85, 1
    %v90 = vsel %vm88, %v89, %v85
    %v91 = vadd.s32 %v86, %v90
    %v92 = vadd.s32 %v91, 536870912
    %v93 = vshrl.u32 %v92, 30
    %v94 = vshll.u32 %v93, 30
    %v95 = vsub.s32 %v91, %v94
    %vm96 = vcmp.lt.s32.totalorder %v95, 0
    %v97 = vsub.s32 0, %v95
    %v98 = vsel %vm96, %v97, %v95
    %v99 = vclz %v98
    %v100 = vsub.s32 %v99, 2
    %vm101 = vcmp.gt.s32.totalorder 0, %v100
    %v102 = vsel %vm101, 0, %v100
    %v103 = vsub.s32 32, %v102
    %v104 = vshll.u32 %v95, %v102
    %v105 = vshrl.u32 %v87, %v103
    %v106 = vor.u32 %v104, %v105
    %v107 = vsub.s32 4294967266, %v102
    %v108 = vadd.s32 %v107, 127
    %v109 = vshll.u32 %v108, 23
    %v110 = vor.u32 4788187, %v109
    %v111 = vand.u32 2147483647, %v110
    %v113 = vcvt.s32.f32 %v106
    %v114 = vmul.f32 %v113, %v111
    %v115 = vxor.u32 %v114, 2147483648
    %v116 = vsel %vm33, %v115, %v114
    %v117 = vsub.s32 4, %v93
    %v118 = vsel %vm33, %v117, %v93
    %v119 = vsel %vm32, %v30, %v116
    %v120 = vsel %vm32, 0, %v118
    %v121 = vcosq.f32.pop %v119
    %v122 = vsinq.f32.pop %v119
    %vm123 = vweird.f32 %v30
    %v124 = vadd.s32 %v120, 3
    %v125 = vand.u32 %v124, 3
    %vm126 = vcmp.lt.s32.totalorder %v125, 2
    %vm127 = vcmp.eq.s32.totalorder %v125, 0
    %v128 = vxor.u32 %v122, 2147483648
    %v129 = vsel %vm127, %v121, %v128
    %vm130 = vcmp.eq.s32.totalorder %v125, 2
    %v131 = vxor.u32 %v121, 2147483648
    %v132 = vsel %vm130, %v131, %v122
    %v133 = vsel %vm126, %v129, %v132
    %v134 = vsel %vm123, nan, %v133
    %v135 = vlaneseq
    %v136 = vshrl.u32 %v135, 7
    %v137 = vlaneseq
    %v138 = vand.u32 %v137, 127
    %s139 = sadd.s32 0, 0
    %s140 = smul.u32 %s139, 8
    %v141 = vstv %s140
    %v142 = vadd.s32 %v141, %v136
    %v143 = vmul.u32 %v142, 128
    %v144 = vadd.s32 %v143, %v138
    %vm145 = vcmp.lt.s32.totalorder %v144, 100
    %v146 = vsel %vm145, %v134, -1.0
    %v147 = vld [vmem:[#allocation2] sm:$0xff]
    %v148 = vmax.f32 %v147, %v146
    %149 = vst [vmem:[#allocation2] sm:$0xff] %v148
    // Predicated region
    $region14: #{tpu_custom_call.1} parent=1 // pred_check
      %p150 = pneg %p25
    $region15: #{tpu_custom_call.1} parent=1 // pred_check_branch
      %152 = sbr.rel (%p150) target = $region17
    $region16: #{tpu_custom_call.1} parent=1 // pred_region
      %v153 = vld [vmem:[#allocation2] sm:$0xff]
      %154 = vst [vmem:[#allocation6] sm:$0xff] %v153
    $region17: #{tpu_custom_call.1} parent=1 // pred_fallthru
      _
    // Predicated region
    $region18: #{tpu_custom_call.1} parent=1 // pred_check
      _
    $region19: #{tpu_custom_call.1} parent=1 // pred_check_branch
      %156 = sbr.rel (0) target = $region21
    $region20: #{tpu_custom_call.1} parent=1 // pred_region
      %s158 = ssub.s32 128, 128
      %159 = vsyncadd [#allocation5], %s158
      %s161 = sshll.u32 [#allocation6], 4
      %s162 = int_to_ptr.vmem [resolvable:$true] %s161
      %164 = dma.vmem_to_hbm [thread:$0]  %s162, 128, %s1, [#allocation5]
    $region21: #{tpu_custom_call.1} parent=1 // pred_fallthru
      _
    // Predicated region
    $region22: #{tpu_custom_call.1} parent=1 // pred_check
      _
    $region23: #{tpu_custom_call.1} parent=1 // pred_check_branch
      %166 = sbr.rel (0) target = $region25
    $region24: #{tpu_custom_call.1} parent=1 // pred_region
      %167 = dma.done [#allocation5], 128
    $region25: #{tpu_custom_call.1} parent=1 // pred_fallthru
      _
    %168 = vsyncpa [#allocation4], 1
    %169 = vsyncpa [#allocation5], 1

</llo_original>
